<compile_context>
chip_gen: v6e
topology: v6e:2x2x1
jax: 0.10.0
libtpu: 0.0.40
codegen_flags: <defaults>
</compile_context>

<pallas_src>
import functools

import jax
import jax.numpy as jnp
from jax.experimental import pallas as pl
from jax.experimental.pallas import tpu as pltpu


def _subspace_kernel(x_ref, m_ref, p_ref, o_ref, *, width, channels):
    """One batch block: x_ref/o_ref are (b_tile, C, HWp) f32 in VMEM.

    p_ref (SMEM, 1-D, length 3*C + 1):
        [0:C)   folded conv_dws+bn_dws scale   [C:2C)  folded conv_dws+bn_dws bias
        [2C:3C) folded conv_point+bn_point weight      [3C] folded point bias.
    m_ref (VMEM, (5, HWp)): tap-from-above/below/left/right pool masks, then the
    valid-lane mask used to exclude padded spatial positions from the softmax.
    """
    hwp = x_ref.shape[-1]

    m_up = m_ref[0:1, :]
    m_dn = m_ref[1:2, :]
    m_lf = m_ref[2:3, :]
    m_rt = m_ref[3:4, :]
    m_ok = m_ref[4:5, :]

    # Channel loop over fully packed (b_tile, HWp) slabs: affine+ReLU, separable
    # 3x3/s1/p1 max-pool via lane rolls, and the point-conv channel reduction.
    # TODO(synk): for very large C (>~256) switch this static unroll to a
    # lax.fori_loop to keep trace/compile time bounded.
    s = None
    for c in range(channels):
        xc = x_ref[:, c, :]                                         # (b_tile, HWp)
        yc = jnp.maximum(xc * p_ref[c] + p_ref[channels + c], 0.0)  # affine + ReLU

        # Vertical 3-max then horizontal 3-max.  roll(y, +k)[i] == y[i - k].
        # Masked taps contribute 0, which never wins because yc >= 0 (ReLU) —
        # keep the ReLU and this pool coupled.
        vc = jnp.maximum(yc, pltpu.roll(yc, width, axis=1) * m_up)
        vc = jnp.maximum(vc, pltpu.roll(yc, hwp - width, axis=1) * m_dn)
        pc = jnp.maximum(vc, pltpu.roll(vc, 1, axis=1) * m_lf)
        pc = jnp.maximum(pc, pltpu.roll(vc, hwp - 1, axis=1) * m_rt)

        contrib = pc * p_ref[2 * channels + c]                      # point-conv term
        s = contrib if s is None else s + contrib

    # conv_point bias + ReLU, then softmax over the valid spatial positions
    # (torch: softmax(dim=2) on the (B, 1, H*W) view).
    s = jnp.maximum(s + p_ref[3 * channels], 0.0)                   # (b_tile, HWp)
    s = jnp.where(m_ok > 0.0, s, -jnp.inf)                          # drop padded lanes
    mx = jnp.max(s, axis=1, keepdims=True)
    e = jnp.exp(s - mx)
    inv = pl.reciprocal(jnp.sum(e, axis=1, keepdims=True), approx=True)
    scale = e * inv + 1.0                                           # attn + residual

    # out = x * (attn + 1), the attention map broadcast over channels.
    for c in range(channels):
        o_ref[:, c, :] = (x_ref[:, c, :] * scale).astype(o_ref.dtype)


def subspace_forward(x, a_dws, b_dws, w_pt, c_pt, *, b_tile=None, vmem_limit_bytes=None):
    """x: (B, C, H, W) f32; folded affine params from the convs + eval-mode BNs."""
    B, C, H, W = x.shape
    HW = H * W
    HWp = ((HW + 127) // 128) * 128            # lane-dense spatial axis

    # Per-generation VMEM budget: ~3/4 of physical, clamped to [32, 96] MiB
    # (v5e/v6e: 128 MiB phys -> 96 MiB; v7x: 64 MiB per-TC -> 48 MiB).
    if vmem_limit_bytes is None:
        try:
            phys = int(pltpu.get_tpu_info().vmem_capacity_bytes)
        except Exception:
            phys = 64 * 1024 * 1024            # conservative default (v7x per-TC)
        vmem_limit_bytes = max(32 << 20, min((phys * 3) // 4, 96 << 20))

    # Batch tile sized against the real budget: ~8x working set per block
    # (2x double-buffered input + 2x output + live intermediates).
    cp = ((C + 7) // 8) * 8                    # sublane-padded channels in VMEM
    bytes_per_batch = cp * HWp * 4
    if b_tile is None:
        b_max = max(1, vmem_limit_bytes // (8 * bytes_per_batch))
        b_tile = min(B, b_max)
        if b_tile >= B and B > 1:
            # Prefer >= 2 grid steps so both v7x TensorCores get work, as long as
            # blocks keep >= 8 batch rows (full sublane slabs) or the whole
            # problem is tiny anyway; extra ~0.35us/step is negligible on 1-TC chips.
            half = (B + 1) // 2
            if half >= 8 or B * bytes_per_batch <= (1 << 20):
                b_tile = half
        if 8 < b_tile < B:
            b_tile = (b_tile // 8) * 8         # keep per-channel slabs sublane-aligned
    b_tile = int(max(1, min(b_tile, B)))

    block_bytes = b_tile * bytes_per_batch
    if 8 * block_bytes > vmem_limit_bytes:
        # Even a single-batch block overflows the headroom target: raise the limit
        # instead of failing.  TODO(synk): for very large C*H*W, tile the HW axis
        # with a 1-pixel pool halo and a two-pass (running max/sum) softmax.
        vmem_limit_bytes = min(8 * block_bytes, 120 << 20)

    grid = (pl.cdiv(B, b_tile),)

    # Pool boundary masks + valid-lane mask, built once in the wrapper so the
    # kernel needs no integer div/mod on the flattened spatial index.
    pos = jnp.arange(HWp, dtype=jnp.int32)
    row = pos // W
    col = pos % W
    valid = pos < HW
    masks = jnp.stack([
        (row > 0) & valid,       # tap from row r-1
        (row < H - 1) & valid,   # tap from row r+1
        (col > 0) & valid,       # tap from col c-1
        (col < W - 1) & valid,   # tap from col c+1
        valid,                   # lane participates in the softmax
    ]).astype(jnp.float32)                     # (5, HWp)

    # All per-channel scalars packed into one 1-D SMEM buffer (single tiny DMA).
    params = jnp.concatenate([
        jnp.asarray(a_dws, jnp.float32).reshape(C),
        jnp.asarray(b_dws, jnp.float32).reshape(C),
        jnp.asarray(w_pt, jnp.float32).reshape(C),
        jnp.asarray(c_pt, jnp.float32).reshape(1),
    ])                                         # (3*C + 1,)

    xf = x.astype(jnp.float32).reshape(B, C, HW)
    if HWp != HW:
        xf = jnp.pad(xf, ((0, 0), (0, 0), (0, HWp - HW)))

    # NOTE(v5e): if a trace shows exposed DMA, add pipeline_mode=pl.Buffered(3)
    # to the x input spec below (v5e has the lowest HBM bandwidth per core).
    out = pl.pallas_call(
        functools.partial(_subspace_kernel, width=W, channels=C),
        out_shape=jax.ShapeDtypeStruct((B, C, HWp), jnp.float32),
        grid=grid,
        in_specs=[
            pl.BlockSpec((b_tile, C, HWp), lambda i: (i, 0, 0)),    # x batch block
            pl.BlockSpec((5, HWp), lambda i: (0, 0)),               # pool/lane masks
            pl.BlockSpec(memory_space=pltpu.MemorySpace.SMEM),      # packed scalars
        ],
        out_specs=pl.BlockSpec((b_tile, C, HWp), lambda i: (i, 0, 0)),
        compiler_params=pltpu.CompilerParams(
            dimension_semantics=("parallel",),
            vmem_limit_bytes=int(vmem_limit_bytes),
        ),
    )(xf, masks, params)
    return out[:, :, :HW].reshape(B, C, H, W).astype(x.dtype)


def ref_forward(x, a_dws, b_dws, w_pt, c_pt):
    """Pure-JAX reference of the same (eval-mode) forward pass."""
    B, C, H, W = x.shape
    y = jnp.maximum(x * a_dws.reshape(1, C, 1, 1) + b_dws.reshape(1, C, 1, 1), 0.0)
    yp = jnp.pad(y, ((0, 0), (0, 0), (1, 1), (1, 1)))
    pooled = y
    for dh in range(3):
        for dw in range(3):
            pooled = jnp.maximum(pooled, yp[:, :, dh:dh + H, dw:dw + W])
    s = jnp.maximum(
        jnp.sum(pooled * w_pt.reshape(1, C, 1, 1), axis=1) + c_pt[0], 0.0)   # (B,H,W)
    attn = jax.nn.softmax(s.reshape(B, -1), axis=-1).reshape(B, 1, H, W)
    return x * attn + x


if __name__ == "__main__":
    B, C, H, W = 2, 4, 16, 16
    eps = 1e-5

    key = jax.random.PRNGKey(0)
    ks = jax.random.split(key, 13)

    x = jax.random.normal(ks[0], (B, C, H, W), dtype=jnp.float32)

    # nn.Conv2d(nin, nin, 1, groups=nin): weight (C,1,1,1), bias (C,)
    w_dws = jax.random.normal(ks[1], (C,), dtype=jnp.float32) * 0.5
    b_dws = jax.random.normal(ks[2], (C,), dtype=jnp.float32) * 0.1
    # nn.BatchNorm2d(nin) (eval): gamma, beta, running_mean, running_var
    g_dws = jax.random.uniform(ks[3], (C,), minval=0.5, maxval=1.5)
    be_dws = jax.random.normal(ks[4], (C,), dtype=jnp.float32) * 0.1
    mu_dws = jax.random.normal(ks[5], (C,), dtype=jnp.float32) * 0.1
    var_dws = jax.random.uniform(ks[6], (C,), minval=0.5, maxval=1.5)
    # nn.Conv2d(nin, 1, 1): weight (1,C,1,1), bias (1,)
    w_pt = jax.random.normal(ks[7], (C,), dtype=jnp.float32) * 0.5
    b_pt = jax.random.normal(ks[8], (), dtype=jnp.float32) * 0.1
    # nn.BatchNorm2d(1) (eval)
    g_pt = jax.random.uniform(ks[9], (), minval=0.5, maxval=1.5)
    be_pt = jax.random.normal(ks[10], (), dtype=jnp.float32) * 0.1
    mu_pt = jax.random.normal(ks[11], (), dtype=jnp.float32) * 0.1
    var_pt = jax.random.uniform(ks[12], (), minval=0.5, maxval=1.5)

    # Fold conv_dws + bn_dws into per-channel affine y = a*x + b
    inv_dws = g_dws / jnp.sqrt(var_dws + eps)
    a_eff = (w_dws * inv_dws).astype(jnp.float32)                       # (C,)
    b_eff = ((b_dws - mu_dws) * inv_dws + be_dws).astype(jnp.float32)   # (C,)
    # Fold conv_point + bn_point into s = sum_c w_eff[c]*pooled[c] + c_eff
    inv_pt = g_pt / jnp.sqrt(var_pt + eps)
    w_eff = (w_pt * inv_pt).astype(jnp.float32)                         # (C,)
    c_eff = jnp.asarray([(b_pt - mu_pt) * inv_pt + be_pt], dtype=jnp.float32)  # (1,)

    out = subspace_forward(x, a_eff, b_eff, w_eff, c_eff)
    out = jax.block_until_ready(out)

    ref = ref_forward(x, a_eff, b_eff, w_eff, c_eff)
    assert out.shape == (B, C, H, W)
    # Tolerance sized for the EUP approximate reciprocal in the softmax normalizer.
    assert jnp.allclose(out, ref, atol=1e-4, rtol=1e-4), "Pallas kernel mismatch vs reference"

    print("KERNEL_OK")
</pallas_src>

<mosaic_0001>
module attributes {stable_mosaic.version = 11 : i64} {
  func.func @_subspace_kernel(%arg0: i32, %arg1: memref<1x4x256xf32, #tpu.memory_space<vmem>>, %arg2: memref<5x256xf32, #tpu.memory_space<vmem>>, %arg3: memref<13xf32, #tpu.memory_space<smem>>, %arg4: memref<1x4x256xf32, #tpu.memory_space<vmem>>) attributes {dimension_semantics = [#tpu.dimension_semantics<parallel>], iteration_bounds = array<i64: 2>, scalar_prefetch = 0 : i64, scratch_operands = 0 : i64, tpu.core_type = #tpu.core_type<tc>, window_params = [{transform_indices = @transform_0, window_bounds = array<i64: 1, 4, 256>}, {pipeline_mode = #tpu.pipeline_mode<synchronous>, transform_indices = @transform_1, window_bounds = array<i64: 5, 256>}, {transform_indices = @transform_2, window_bounds = array<i64: 13>}, {transform_indices = @transform_3, window_bounds = array<i64: 1, 4, 256>}]} {
    %c0 = arith.constant 0 : index
    %c0_0 = arith.constant 0 : index
    %0 = vector.load %arg2[%c0, %c0_0] : memref<5x256xf32, #tpu.memory_space<vmem>>, vector<1x256xf32>
    %c1 = arith.constant 1 : index
    %c0_1 = arith.constant 0 : index
    %1 = vector.load %arg2[%c1, %c0_1] : memref<5x256xf32, #tpu.memory_space<vmem>>, vector<1x256xf32>
    %c2 = arith.constant 2 : index
    %c0_2 = arith.constant 0 : index
    %2 = vector.load %arg2[%c2, %c0_2] : memref<5x256xf32, #tpu.memory_space<vmem>>, vector<1x256xf32>
    %c3 = arith.constant 3 : index
    %c0_3 = arith.constant 0 : index
    %3 = vector.load %arg2[%c3, %c0_3] : memref<5x256xf32, #tpu.memory_space<vmem>>, vector<1x256xf32>
    %c4 = arith.constant 4 : index
    %c0_4 = arith.constant 0 : index
    %4 = vector.load %arg2[%c4, %c0_4] : memref<5x256xf32, #tpu.memory_space<vmem>>, vector<1x256xf32>
    %c0_5 = arith.constant 0 : index
    %c0_6 = arith.constant 0 : index
    %c0_7 = arith.constant 0 : index
    %5 = vector.load %arg1[%c0_5, %c0_6, %c0_7] : memref<1x4x256xf32, #tpu.memory_space<vmem>>, vector<1x1x256xf32>
    %6 = vector.shape_cast %5 : vector<1x1x256xf32> to vector<1x256xf32>
    %c0_8 = arith.constant 0 : index
    %7 = memref.load %arg3[%c0_8] : memref<13xf32, #tpu.memory_space<smem>>
    %8 = vector.broadcast %7 : f32 to vector<1x256xf32>
    %9 = arith.mulf %6, %8 : vector<1x256xf32>
    %c4_9 = arith.constant 4 : index
    %10 = memref.load %arg3[%c4_9] : memref<13xf32, #tpu.memory_space<smem>>
    %11 = vector.broadcast %10 : f32 to vector<1x256xf32>
    %12 = arith.addf %9, %11 : vector<1x256xf32>
    %cst = arith.constant 0.000000e+00 : f32
    %13 = vector.broadcast %cst : f32 to vector<1x256xf32>
    %14 = arith.maximumf %12, %13 : vector<1x256xf32>
    %c16_i32 = arith.constant 16 : i32
    %15 = tpu.dynamic_rotate %14 by %c16_i32 dim 1 : vector<1x256xf32>, i32 -> vector<1x256xf32>
    %16 = arith.mulf %15, %0 : vector<1x256xf32>
    %17 = arith.maximumf %14, %16 : vector<1x256xf32>
    %c240_i32 = arith.constant 240 : i32
    %18 = tpu.dynamic_rotate %14 by %c240_i32 dim 1 : vector<1x256xf32>, i32 -> vector<1x256xf32>
    %19 = arith.mulf %18, %1 : vector<1x256xf32>
    %20 = arith.maximumf %17, %19 : vector<1x256xf32>
    %c1_i32 = arith.constant 1 : i32
    %21 = tpu.dynamic_rotate %20 by %c1_i32 dim 1 : vector<1x256xf32>, i32 -> vector<1x256xf32>
    %22 = arith.mulf %21, %2 : vector<1x256xf32>
    %23 = arith.maximumf %20, %22 : vector<1x256xf32>
    %c255_i32 = arith.constant 255 : i32
    %24 = tpu.dynamic_rotate %20 by %c255_i32 dim 1 : vector<1x256xf32>, i32 -> vector<1x256xf32>
    %25 = arith.mulf %24, %3 : vector<1x256xf32>
    %26 = arith.maximumf %23, %25 : vector<1x256xf32>
    %c8 = arith.constant 8 : index
    %27 = memref.load %arg3[%c8] : memref<13xf32, #tpu.memory_space<smem>>
    %28 = vector.broadcast %27 : f32 to vector<1x256xf32>
    %29 = arith.mulf %26, %28 : vector<1x256xf32>
    %c0_10 = arith.constant 0 : index
    %c1_11 = arith.constant 1 : index
    %c0_12 = arith.constant 0 : index
    %30 = vector.load %arg1[%c0_10, %c1_11, %c0_12] : memref<1x4x256xf32, #tpu.memory_space<vmem>>, vector<1x1x256xf32>
    %31 = vector.shape_cast %30 : vector<1x1x256xf32> to vector<1x256xf32>
    %c1_13 = arith.constant 1 : index
    %32 = memref.load %arg3[%c1_13] : memref<13xf32, #tpu.memory_space<smem>>
    %33 = vector.broadcast %32 : f32 to vector<1x256xf32>
    %34 = arith.mulf %31, %33 : vector<1x256xf32>
    %c5 = arith.constant 5 : index
    %35 = memref.load %arg3[%c5] : memref<13xf32, #tpu.memory_space<smem>>
    %36 = vector.broadcast %35 : f32 to vector<1x256xf32>
    %37 = arith.addf %34, %36 : vector<1x256xf32>
    %cst_14 = arith.constant 0.000000e+00 : f32
    %38 = vector.broadcast %cst_14 : f32 to vector<1x256xf32>
    %39 = arith.maximumf %37, %38 : vector<1x256xf32>
    %c16_i32_15 = arith.constant 16 : i32
    %40 = tpu.dynamic_rotate %39 by %c16_i32_15 dim 1 : vector<1x256xf32>, i32 -> vector<1x256xf32>
    %41 = arith.mulf %40, %0 : vector<1x256xf32>
    %42 = arith.maximumf %39, %41 : vector<1x256xf32>
    %c240_i32_16 = arith.constant 240 : i32
    %43 = tpu.dynamic_rotate %39 by %c240_i32_16 dim 1 : vector<1x256xf32>, i32 -> vector<1x256xf32>
    %44 = arith.mulf %43, %1 : vector<1x256xf32>
    %45 = arith.maximumf %42, %44 : vector<1x256xf32>
    %c1_i32_17 = arith.constant 1 : i32
    %46 = tpu.dynamic_rotate %45 by %c1_i32_17 dim 1 : vector<1x256xf32>, i32 -> vector<1x256xf32>
    %47 = arith.mulf %46, %2 : vector<1x256xf32>
    %48 = arith.maximumf %45, %47 : vector<1x256xf32>
    %c255_i32_18 = arith.constant 255 : i32
    %49 = tpu.dynamic_rotate %45 by %c255_i32_18 dim 1 : vector<1x256xf32>, i32 -> vector<1x256xf32>
    %50 = arith.mulf %49, %3 : vector<1x256xf32>
    %51 = arith.maximumf %48, %50 : vector<1x256xf32>
    %c9 = arith.constant 9 : index
    %52 = memref.load %arg3[%c9] : memref<13xf32, #tpu.memory_space<smem>>
    %53 = vector.broadcast %52 : f32 to vector<1x256xf32>
    %54 = arith.mulf %51, %53 : vector<1x256xf32>
    %55 = arith.addf %29, %54 : vector<1x256xf32>
    %c0_19 = arith.constant 0 : index
    %c2_20 = arith.constant 2 : index
    %c0_21 = arith.constant 0 : index
    %56 = vector.load %arg1[%c0_19, %c2_20, %c0_21] : memref<1x4x256xf32, #tpu.memory_space<vmem>>, vector<1x1x256xf32>
    %57 = vector.shape_cast %56 : vector<1x1x256xf32> to vector<1x256xf32>
    %c2_22 = arith.constant 2 : index
    %58 = memref.load %arg3[%c2_22] : memref<13xf32, #tpu.memory_space<smem>>
    %59 = vector.broadcast %58 : f32 to vector<1x256xf32>
    %60 = arith.mulf %57, %59 : vector<1x256xf32>
    %c6 = arith.constant 6 : index
    %61 = memref.load %arg3[%c6] : memref<13xf32, #tpu.memory_space<smem>>
    %62 = vector.broadcast %61 : f32 to vector<1x256xf32>
    %63 = arith.addf %60, %62 : vector<1x256xf32>
    %cst_23 = arith.constant 0.000000e+00 : f32
    %64 = vector.broadcast %cst_23 : f32 to vector<1x256xf32>
    %65 = arith.maximumf %63, %64 : vector<1x256xf32>
    %c16_i32_24 = arith.constant 16 : i32
    %66 = tpu.dynamic_rotate %65 by %c16_i32_24 dim 1 : vector<1x256xf32>, i32 -> vector<1x256xf32>
    %67 = arith.mulf %66, %0 : vector<1x256xf32>
    %68 = arith.maximumf %65, %67 : vector<1x256xf32>
    %c240_i32_25 = arith.constant 240 : i32
    %69 = tpu.dynamic_rotate %65 by %c240_i32_25 dim 1 : vector<1x256xf32>, i32 -> vector<1x256xf32>
    %70 = arith.mulf %69, %1 : vector<1x256xf32>
    %71 = arith.maximumf %68, %70 : vector<1x256xf32>
    %c1_i32_26 = arith.constant 1 : i32
    %72 = tpu.dynamic_rotate %71 by %c1_i32_26 dim 1 : vector<1x256xf32>, i32 -> vector<1x256xf32>
    %73 = arith.mulf %72, %2 : vector<1x256xf32>
    %74 = arith.maximumf %71, %73 : vector<1x256xf32>
    %c255_i32_27 = arith.constant 255 : i32
    %75 = tpu.dynamic_rotate %71 by %c255_i32_27 dim 1 : vector<1x256xf32>, i32 -> vector<1x256xf32>
    %76 = arith.mulf %75, %3 : vector<1x256xf32>
    %77 = arith.maximumf %74, %76 : vector<1x256xf32>
    %c10 = arith.constant 10 : index
    %78 = memref.load %arg3[%c10] : memref<13xf32, #tpu.memory_space<smem>>
    %79 = vector.broadcast %78 : f32 to vector<1x256xf32>
    %80 = arith.mulf %77, %79 : vector<1x256xf32>
    %81 = arith.addf %55, %80 : vector<1x256xf32>
    %c0_28 = arith.constant 0 : index
    %c3_29 = arith.constant 3 : index
    %c0_30 = arith.constant 0 : index
    %82 = vector.load %arg1[%c0_28, %c3_29, %c0_30] : memref<1x4x256xf32, #tpu.memory_space<vmem>>, vector<1x1x256xf32>
    %83 = vector.shape_cast %82 : vector<1x1x256xf32> to vector<1x256xf32>
    %c3_31 = arith.constant 3 : index
    %84 = memref.load %arg3[%c3_31] : memref<13xf32, #tpu.memory_space<smem>>
    %85 = vector.broadcast %84 : f32 to vector<1x256xf32>
    %86 = arith.mulf %83, %85 : vector<1x256xf32>
    %c7 = arith.constant 7 : index
    %87 = memref.load %arg3[%c7] : memref<13xf32, #tpu.memory_space<smem>>
    %88 = vector.broadcast %87 : f32 to vector<1x256xf32>
    %89 = arith.addf %86, %88 : vector<1x256xf32>
    %cst_32 = arith.constant 0.000000e+00 : f32
    %90 = vector.broadcast %cst_32 : f32 to vector<1x256xf32>
    %91 = arith.maximumf %89, %90 : vector<1x256xf32>
    %c16_i32_33 = arith.constant 16 : i32
    %92 = tpu.dynamic_rotate %91 by %c16_i32_33 dim 1 : vector<1x256xf32>, i32 -> vector<1x256xf32>
    %93 = arith.mulf %92, %0 : vector<1x256xf32>
    %94 = arith.maximumf %91, %93 : vector<1x256xf32>
    %c240_i32_34 = arith.constant 240 : i32
    %95 = tpu.dynamic_rotate %91 by %c240_i32_34 dim 1 : vector<1x256xf32>, i32 -> vector<1x256xf32>
    %96 = arith.mulf %95, %1 : vector<1x256xf32>
    %97 = arith.maximumf %94, %96 : vector<1x256xf32>
    %c1_i32_35 = arith.constant 1 : i32
    %98 = tpu.dynamic_rotate %97 by %c1_i32_35 dim 1 : vector<1x256xf32>, i32 -> vector<1x256xf32>
    %99 = arith.mulf %98, %2 : vector<1x256xf32>
    %100 = arith.maximumf %97, %99 : vector<1x256xf32>
    %c255_i32_36 = arith.constant 255 : i32
    %101 = tpu.dynamic_rotate %97 by %c255_i32_36 dim 1 : vector<1x256xf32>, i32 -> vector<1x256xf32>
    %102 = arith.mulf %101, %3 : vector<1x256xf32>
    %103 = arith.maximumf %100, %102 : vector<1x256xf32>
    %c11 = arith.constant 11 : index
    %104 = memref.load %arg3[%c11] : memref<13xf32, #tpu.memory_space<smem>>
    %105 = vector.broadcast %104 : f32 to vector<1x256xf32>
    %106 = arith.mulf %103, %105 : vector<1x256xf32>
    %107 = arith.addf %81, %106 : vector<1x256xf32>
    %c12 = arith.constant 12 : index
    %108 = memref.load %arg3[%c12] : memref<13xf32, #tpu.memory_space<smem>>
    %109 = vector.broadcast %108 : f32 to vector<1x256xf32>
    %110 = arith.addf %107, %109 : vector<1x256xf32>
    %cst_37 = arith.constant 0.000000e+00 : f32
    %111 = vector.broadcast %cst_37 : f32 to vector<1x256xf32>
    %112 = arith.maximumf %110, %111 : vector<1x256xf32>
    %cst_38 = arith.constant 0.000000e+00 : f32
    %113 = vector.broadcast %cst_38 : f32 to vector<1x256xf32>
    %114 = arith.cmpf ogt, %4, %113 : vector<1x256xf32>
    %cst_39 = arith.constant 0xFF800000 : f32
    %115 = vector.broadcast %cst_39 : f32 to vector<1x256xf32>
    %116 = arith.select %114, %112, %115 : vector<1x256xi1>, vector<1x256xf32>
    %cst_40 = arith.constant dense<0xFF800000> : vector<1xf32>
    %117 = vector.multi_reduction <maximumf>, %116, %cst_40 [1] : vector<1x256xf32> to vector<1xf32>
    %118 = vector.shape_cast %117 : vector<1xf32> to vector<1x1xf32>
    %119 = vector.broadcast %118 : vector<1x1xf32> to vector<1x256xf32>
    %120 = arith.subf %116, %119 : vector<1x256xf32>
    %121 = math.exp %120 : vector<1x256xf32>
    %cst_41 = arith.constant dense<0.000000e+00> : vector<1xf32>
    %122 = vector.multi_reduction <add>, %121, %cst_41 [1] : vector<1x256xf32> to vector<1xf32>
    %123 = vector.shape_cast %122 : vector<1xf32> to vector<1x1xf32>
    %124 = tpu.reciprocal %123 {approx = true} : vector<1x1xf32> -> vector<1x1xf32>
    %125 = vector.broadcast %124 : vector<1x1xf32> to vector<1x256xf32>
    %126 = arith.mulf %121, %125 : vector<1x256xf32>
    %cst_42 = arith.constant 1.000000e+00 : f32
    %127 = vector.broadcast %cst_42 : f32 to vector<1x256xf32>
    %128 = arith.addf %126, %127 : vector<1x256xf32>
    %c0_43 = arith.constant 0 : index
    %c0_44 = arith.constant 0 : index
    %c0_45 = arith.constant 0 : index
    %129 = vector.load %arg1[%c0_43, %c0_44, %c0_45] : memref<1x4x256xf32, #tpu.memory_space<vmem>>, vector<1x1x256xf32>
    %130 = vector.shape_cast %129 : vector<1x1x256xf32> to vector<1x256xf32>
    %131 = arith.mulf %130, %128 : vector<1x256xf32>
    %c0_46 = arith.constant 0 : index
    %c0_47 = arith.constant 0 : index
    %c0_48 = arith.constant 0 : index
    %132 = vector.load %arg4[%c0_46, %c0_47, %c0_48] : memref<1x4x256xf32, #tpu.memory_space<vmem>>, vector<1x1x256xf32>
    %133 = vector.shape_cast %132 : vector<1x1x256xf32> to vector<1x256xf32>
    %134 = vector.shape_cast %131 : vector<1x256xf32> to vector<1x1x256xf32>
    tpu.vector_store %arg4[%c0_46, %c0_47, %c0_48], %134 {strides = array<i32>} : memref<1x4x256xf32, #tpu.memory_space<vmem>>, vector<1x1x256xf32>,
    %c0_49 = arith.constant 0 : index
    %c1_50 = arith.constant 1 : index
    %c0_51 = arith.constant 0 : index
    %135 = vector.load %arg1[%c0_49, %c1_50, %c0_51] : memref<1x4x256xf32, #tpu.memory_space<vmem>>, vector<1x1x256xf32>
    %136 = vector.shape_cast %135 : vector<1x1x256xf32> to vector<1x256xf32>
    %137 = arith.mulf %136, %128 : vector<1x256xf32>
    %c0_52 = arith.constant 0 : index
    %c1_53 = arith.constant 1 : index
    %c0_54 = arith.constant 0 : index
    %138 = vector.load %arg4[%c0_52, %c1_53, %c0_54] : memref<1x4x256xf32, #tpu.memory_space<vmem>>, vector<1x1x256xf32>
    %139 = vector.shape_cast %138 : vector<1x1x256xf32> to vector<1x256xf32>
    %140 = vector.shape_cast %137 : vector<1x256xf32> to vector<1x1x256xf32>
    tpu.vector_store %arg4[%c0_52, %c1_53, %c0_54], %140 {strides = array<i32>} : memref<1x4x256xf32, #tpu.memory_space<vmem>>, vector<1x1x256xf32>,
    %c0_55 = arith.constant 0 : index
    %c2_56 = arith.constant 2 : index
    %c0_57 = arith.constant 0 : index
    %141 = vector.load %arg1[%c0_55, %c2_56, %c0_57] : memref<1x4x256xf32, #tpu.memory_space<vmem>>, vector<1x1x256xf32>
    %142 = vector.shape_cast %141 : vector<1x1x256xf32> to vector<1x256xf32>
    %143 = arith.mulf %142, %128 : vector<1x256xf32>
    %c0_58 = arith.constant 0 : index
    %c2_59 = arith.constant 2 : index
    %c0_60 = arith.constant 0 : index
    %144 = vector.load %arg4[%c0_58, %c2_59, %c0_60] : memref<1x4x256xf32, #tpu.memory_space<vmem>>, vector<1x1x256xf32>
    %145 = vector.shape_cast %144 : vector<1x1x256xf32> to vector<1x256xf32>
    %146 = vector.shape_cast %143 : vector<1x256xf32> to vector<1x1x256xf32>
    tpu.vector_store %arg4[%c0_58, %c2_59, %c0_60], %146 {strides = array<i32>} : memref<1x4x256xf32, #tpu.memory_space<vmem>>, vector<1x1x256xf32>,
    %c0_61 = arith.constant 0 : index
    %c3_62 = arith.constant 3 : index
    %c0_63 = arith.constant 0 : index
    %147 = vector.load %arg1[%c0_61, %c3_62, %c0_63] : memref<1x4x256xf32, #tpu.memory_space<vmem>>, vector<1x1x256xf32>
    %148 = vector.shape_cast %147 : vector<1x1x256xf32> to vector<1x256xf32>
    %149 = arith.mulf %148, %128 : vector<1x256xf32>
    %c0_64 = arith.constant 0 : index
    %c3_65 = arith.constant 3 : index
    %c0_66 = arith.constant 0 : index
    %150 = vector.load %arg4[%c0_64, %c3_65, %c0_66] : memref<1x4x256xf32, #tpu.memory_space<vmem>>, vector<1x1x256xf32>
    %151 = vector.shape_cast %150 : vector<1x1x256xf32> to vector<1x256xf32>
    %152 = vector.shape_cast %149 : vector<1x256xf32> to vector<1x1x256xf32>
    tpu.vector_store %arg4[%c0_64, %c3_65, %c0_66], %152 {strides = array<i32>} : memref<1x4x256xf32, #tpu.memory_space<vmem>>, vector<1x1x256xf32>,
    return
  }
  func.func @transform_0(%arg0: i32) -> (i32, i32, i32) {
    %c0_i32 = arith.constant 0 : i32
    %c0_i32_0 = arith.constant 0 : i32
    %c0_i32_1 = arith.constant 0 : i32
    return %arg0, %c0_i32, %c0_i32_0 : i32, i32, i32
  }
  func.func @transform_1(%arg0: i32) -> (i32, i32) {
    %c0_i32 = arith.constant 0 : i32
    %c0_i32_0 = arith.constant 0 : i32
    %c0_i32_1 = arith.constant 0 : i32
    return %c0_i32, %c0_i32_0 : i32, i32
  }
  func.func @transform_2(%arg0: i32) -> i32 {
    %c0_i32 = arith.constant 0 : i32
    %c0_i32_0 = arith.constant 0 : i32
    return %c0_i32 : i32
  }
  func.func @transform_3(%arg0: i32) -> (i32, i32, i32) {
    %c0_i32 = arith.constant 0 : i32
    %c0_i32_0 = arith.constant 0 : i32
    %c0_i32_1 = arith.constant 0 : i32
    return %arg0, %c0_i32, %c0_i32_0 : i32, i32, i32
  }
}

</mosaic_0001>

<llo_original>
// kernel: tpu_custom_call.1
$region0: #{tpu_custom_call.1}
  #allocation0 [shape = 'u32[]', space=smem, size = 0x4, offset = 0x4, fixed_abs, tag = 'smem constant byte address 0x4 - core index']
  #allocation1 [shape = 'u32[144,128]{1,0:T(1,128)}', space=vmem, size = 0x12000, scoped, tag = 'internal scratch']
  %s0 = inlined_call_operand.hbm [shape: f32[2,4,256], index: 0, kind: input, shape index: {}]
  %s1 = inlined_call_operand.hbm [shape: f32[5,256], index: 1, kind: input, shape index: {}]
  %s2 = inlined_call_operand.vmem [shape: f32[13], index: 2, kind: input, shape index: {}]
  %s3 = inlined_call_operand.hbm [shape: f32[2,4,256], index: 3, kind: output, shape index: {}]
  %s4 = sld [smem:[#allocation0]]
  $region57: #{tpu_custom_call.1} parent=0
    _
  %s6 = ssub.s32 1, %s4
  %s7 = scalar_select 0, %s6, %s4
  $region1: #{tpu_custom_call.1} parent=0
    #allocation2 [shape = 'u8[8192]{0}', space=vmem, size = 0x2000, scoped, tag = 'input window, operand 0']
    #allocation3 [shape = 's32[2]{0}', space=sflag, size = 0x8, scoped, tag = 'scoped memory for tpu_custom_call.1']
    #allocation4 [shape = 's32[2]{0}', space=sflag, size = 0x8, scoped, tag = 'scoped memory for tpu_custom_call.1']
    #allocation5 [shape = 's32[2]{0}', space=sflag, size = 0x8, scoped, tag = 'scoped memory for tpu_custom_call.1']
    #allocation6 [shape = 'u8[8192]{0}', space=vmem, size = 0x2000, scoped, tag = 'input window, operand 1, single buffered']
    #allocation7 [shape = 's32[1]{0}', space=sflag, size = 0x4, scoped, tag = 'scoped memory for tpu_custom_call.1']
    #allocation8 [shape = 'u8[512]{0}', space=smem, size = 0x200, scoped, tag = 'input window, operand 2, single buffered']
    #allocation9 [shape = 'u8[8192]{0}', space=vmem, size = 0x2000, scoped, tag = 'output window, operand 0']
    %8 = vsyncpa [#allocation3], 0
    %s9 = scalar_lea.sflag [#allocation3], 1
    %10 = vsyncpa %s9, 0
    %11 = vsyncpa [#allocation7], 0
    %12 = vsyncpa [#allocation5], 0
    %13 = vsyncpa [#allocation4], 0
    %s14 = scalar_lea.sflag [#allocation4], 1
    %15 = vsyncpa %s14, 0
    loop: start=0, step=1, limit=4
    $region2: #{tpu_custom_call.1} parent=1 // loop_pre_header
      _
    $region3: #{tpu_custom_call.1} parent=1 // loop_header
      %s17 = sphi 0, %s21
      %p18 = scmp.ge.s32.totalorder %s17, 4
      %s27 = sphi 0, %s29
      %s30 = sphi 0, %s27
      %s31 = sphi 0, %s30
      %s47 = sphi 0, %s31
      %s51 = sphi 0, %s51
      %s53 = sphi 0, %s51
      %s54 = sphi 0, %s53
      %s68 = sphi 0, %s54
      %s72 = sphi 0, %s72
      %s74 = sphi 0, %s72
      %s75 = sphi 0, %s74
      %s89 = sphi 0, %s75
      %s95 = sphi 0, %s97
      %s98 = sphi 0, %s95
      %s99 = sphi 0, %s98
      %s115 = sphi 0, %s99
    $region4: #{tpu_custom_call.1} parent=1 // loop_header_branch
      %20 = sbr.rel (%p18) target = $region8
    $region5: #{tpu_custom_call.1} parent=1 // loop_body
      %s22 = ssub.s32 %s17, 1
      %s23 = ssub.s32 %s17, 2
      %s24 = sadd.s32 %s17, 1
      %s25 = ssub.s32 %s17, %s24
      %p26 = scmp.eq.s32.totalorder %s25, 0
      %s28 = sadd.s32 %s27, 1
      %s29 = scalar_select %p26, %s27, %s28
      %p32 = pneg %p26
      %p33 = scmp.eq.s32.totalorder %s17, 1
      %p34 = por %p32, %p33
      %p35 = scmp.ne.s32.totalorder %s27, %s30
      %p36 = scmp.eq.s32.totalorder %s17, 0
      %p37 = por %p35, %p36
      %p38 = scmp.ne.s32.totalorder %s27, %s30
      %p39 = scmp.eq.s32.totalorder %s22, 1
      %p40 = por %p38, %p39
      %p41 = scmp.ne.s32.totalorder %s30, %s31
      %p42 = scmp.eq.s32.totalorder %s22, 0
      %p43 = por %p41, %p42
      %p44 = scmp.ne.s32.totalorder %s30, %s31
      %p45 = scmp.eq.s32.totalorder %s23, 1
      %p46 = por %p44, %p45
      %p48 = scmp.ne.s32.totalorder %s31, %s47
      %p49 = scmp.eq.s32.totalorder %s23, 0
      %p50 = por %p48, %p49
      %s52 = sadd.s32 %s51, 1
      %p55 = scmp.eq.s32.totalorder %s17, 1
      %p56 = scmp.ne.s32.totalorder %s51, %s53
      %p57 = scmp.eq.s32.totalorder %s17, 0
      %p58 = por %p56, %p57
      %p59 = scmp.ne.s32.totalorder %s51, %s53
      %p60 = scmp.eq.s32.totalorder %s22, 1
      %p61 = por %p59, %p60
      %p62 = scmp.ne.s32.totalorder %s53, %s54
      %p63 = scmp.eq.s32.totalorder %s22, 0
      %p64 = por %p62, %p63
      %p65 = scmp.ne.s32.totalorder %s53, %s54
      %p66 = scmp.eq.s32.totalorder %s23, 1
      %p67 = por %p65, %p66
      %p69 = scmp.ne.s32.totalorder %s54, %s68
      %p70 = scmp.eq.s32.totalorder %s23, 0
      %p71 = por %p69, %p70
      %s73 = sadd.s32 %s72, 1
      %p76 = scmp.eq.s32.totalorder %s17, 1
      %p77 = scmp.ne.s32.totalorder %s72, %s74
      %p78 = scmp.eq.s32.totalorder %s17, 0
      %p79 = por %p77, %p78
      %p80 = scmp.ne.s32.totalorder %s72, %s74
      %p81 = scmp.eq.s32.totalorder %s22, 1
      %p82 = por %p80, %p81
      %p83 = scmp.ne.s32.totalorder %s74, %s75
      %p84 = scmp.eq.s32.totalorder %s22, 0
      %p85 = por %p83, %p84
      %p86 = scmp.ne.s32.totalorder %s74, %s75
      %p87 = scmp.eq.s32.totalorder %s23, 1
      %p88 = por %p86, %p87
      %p90 = scmp.ne.s32.totalorder %s75, %s89
      %p91 = scmp.eq.s32.totalorder %s23, 0
      %p92 = por %p90, %p91
      %s93 = ssub.s32 %s17, %s24
      %p94 = scmp.eq.s32.totalorder %s93, 0
      %s96 = sadd.s32 %s95, 1
      %s97 = scalar_select %p94, %s95, %s96
      %p100 = pneg %p94
      %p101 = scmp.eq.s32.totalorder %s17, 1
      %p102 = por %p100, %p101
      %p103 = scmp.ne.s32.totalorder %s95, %s98
      %p104 = scmp.eq.s32.totalorder %s17, 0
      %p105 = por %p103, %p104
      %p106 = scmp.ne.s32.totalorder %s95, %s98
      %p107 = scmp.eq.s32.totalorder %s22, 1
      %p108 = por %p106, %p107
      %p109 = scmp.ne.s32.totalorder %s98, %s99
      %p110 = scmp.eq.s32.totalorder %s22, 0
      %p111 = por %p109, %p110
      %p112 = scmp.ne.s32.totalorder %s98, %s99
      %p113 = scmp.eq.s32.totalorder %s23, 1
      %p114 = por %p112, %p113
      %p116 = scmp.ne.s32.totalorder %s99, %s115
      %p117 = scmp.eq.s32.totalorder %s23, 0
      %p118 = por %p116, %p117
      %p119 = scmp.le.s32.totalorder 1, %s17
      %p120 = scmp.lt.s32.totalorder %s17, 3
      %p121 = pnand %p119, %p120
      %p122 = pneg %p121
      // Predicated region
      $region9: #{tpu_custom_call.1} parent=5 // pred_check
        _
      $region10: #{tpu_custom_call.1} parent=5 // pred_check_branch
        %124 = sbr.rel (%p121) target = $region12
      $region11: #{tpu_custom_call.1} parent=5 // pred_region
        %s125 = ssub.s32 %s17, 1
        // Predicated region
        $region13: #{tpu_custom_call.1} parent=11 // pred_check
          %p126 = pneg %p64
        $region14: #{tpu_custom_call.1} parent=11 // pred_check_branch
          %128 = sbr.rel (%p126) target = $region16
        $region15: #{tpu_custom_call.1} parent=11 // pred_region
          %s130 = ssub.s32 256, 256
          %131 = vsyncadd [#allocation7], %s130
          %s133 = sshll.u32 [#allocation6], 4
          %s134 = int_to_ptr.vmem [resolvable:$true] %s133
          %136 = dma.hbm_to_vmem [thread:$0]  %s1, 256, %s134, [#allocation7]
        $region16: #{tpu_custom_call.1} parent=11 // pred_fallthru
          _
        // Predicated region
        $region17: #{tpu_custom_call.1} parent=11 // pred_check
          %p137 = pneg %p85
        $region18: #{tpu_custom_call.1} parent=11 // pred_check_branch
          %139 = sbr.rel (%p137) target = $region20
        $region19: #{tpu_custom_call.1} parent=11 // pred_region
          %s141 = ssub.s32 16, 16
          %142 = vsyncadd [#allocation5], %s141
          %s144 = sshll.u32 %s2, 4
          %s145 = int_to_ptr.vmem [resolvable:$true] %s144
          %147 = dma.vmem_to_smem %s145, 16, [#allocation8], [#allocation5]
        $region20: #{tpu_custom_call.1} parent=11 // pred_fallthru
          _
      $region12: #{tpu_custom_call.1} parent=5 // pred_fallthru
        _
      %p148 = scmp.lt.s32.totalorder %s17, 2
      // Predicated region
      $region21: #{tpu_custom_call.1} parent=5 // pred_check
        %p149 = pneg %p148
      $region22: #{tpu_custom_call.1} parent=5 // pred_check_branch
        %151 = sbr.rel (%p149) target = $region24
      $region23: #{tpu_custom_call.1} parent=5 // pred_region
        // Predicated region
        $region25: #{tpu_custom_call.1} parent=23 // pred_check
          %p152 = pneg %p37
        $region26: #{tpu_custom_call.1} parent=23 // pred_check_branch
          %154 = sbr.rel (%p152) target = $region28
        $region27: #{tpu_custom_call.1} parent=23 // pred_region
          %s155 = sand.u32 %s27, 1
          %s156 = scalar_lea.sflag [#allocation3], %s155
          %s157 = sand.u32 %s27, 1
          %s158 = smul.addr %s157, 8
          %s159 = scalar_lea.vmem [#allocation2], %s158
          %s161 = ssub.s32 128, 128
          %162 = vsyncadd %s156, %s161
          %s163 = smul.addr %s17, 2
          %s164 = smul.addr %s163, 64
          %s165 = scalar_lea.hbm %s0, %s164
          %s167 = sshll.u32 %s159, 4
          %s168 = int_to_ptr.vmem [resolvable:$true] %s167
          %170 = dma.hbm_to_vmem [thread:$0]  %s165, 128, %s168, %s156
        $region28: #{tpu_custom_call.1} parent=23 // pred_fallthru
          _
      $region24: #{tpu_custom_call.1} parent=5 // pred_fallthru
        _
      %p171 = scmp.le.s32.totalorder 1, %s17
      %p172 = scmp.lt.s32.totalorder %s17, 3
      %p173 = pnand %p171, %p172
      %p174 = pneg %p173
      // Predicated region
      $region29: #{tpu_custom_call.1} parent=5 // pred_check
        _
      $region30: #{tpu_custom_call.1} parent=5 // pred_check_branch
        %176 = sbr.rel (%p173) target = $region32
      $region31: #{tpu_custom_call.1} parent=5 // pred_region
        %s177 = ssub.s32 %s17, 1
        %s178 = sand.u32 %s30, 1
        %s179 = scalar_lea.sflag [#allocation3], %s178
        %s180 = sand.u32 %s30, 1
        %s181 = smul.addr %s180, 8
        %s182 = scalar_lea.vmem [#allocation2], %s181
        // Predicated region
        $region33: #{tpu_custom_call.1} parent=31 // pred_check
          %p183 = pneg %p43
        $region34: #{tpu_custom_call.1} parent=31 // pred_check_branch
          %185 = sbr.rel (%p183) target = $region36
        $region35: #{tpu_custom_call.1} parent=31 // pred_region
          %186 = dma.done %s179, 128
        $region36: #{tpu_custom_call.1} parent=31 // pred_fallthru
          _
        // Predicated region
        $region37: #{tpu_custom_call.1} parent=31 // pred_check
          %p187 = pneg %p64
        $region38: #{tpu_custom_call.1} parent=31 // pred_check_branch
          %189 = sbr.rel (%p187) target = $region40
        $region39: #{tpu_custom_call.1} parent=31 // pred_region
          %190 = dma.done [#allocation7], 256
        $region40: #{tpu_custom_call.1} parent=31 // pred_fallthru
          _
        // Predicated region
        $region41: #{tpu_custom_call.1} parent=31 // pred_check
          %p191 = pneg %p85
        $region42: #{tpu_custom_call.1} parent=31 // pred_check_branch
          %193 = sbr.rel (%p191) target = $region44
        $region43: #{tpu_custom_call.1} parent=31 // pred_region
          %194 = dma.done [#allocation5], 16
        $region44: #{tpu_custom_call.1} parent=31 // pred_fallthru
          _
        %195 = sfence
        %s196 = sand.u32 %s30, 1
        %s197 = scalar_lea.sflag [#allocation3], %s196
        %s198 = sand.u32 %s30, 1
        %s199 = smul.addr %s198, 8
        %s200 = scalar_lea.vmem [#allocation2], %s199
        %p201 = pneg %p43
        %p202 = pneg %p40
        %p203 = pneg %p64
        %p204 = pneg %p61
        %p205 = pneg %p85
        %p206 = pneg %p82
        %p207 = pneg %p111
        %p208 = pneg %p108
        %s209 = sand.u32 %s98, 1
        %s210 = scalar_lea.sflag [#allocation4], %s209
        %s211 = sand.u32 %s98, 1
        %s212 = smul.addr %s211, 8
        %s213 = scalar_lea.vmem [#allocation9], %s212
        %v214 = vld [vmem:[#allocation6] ss:$8 sm:$0x3]
        %s215 = scalar_lea.vmem [#allocation6], 1
        %v216 = vld [vmem:[%s215] ss:$8 sm:$0x3]
        %s217 = scalar_lea.vmem [#allocation6], 2
        %v218 = vld [vmem:[%s217] ss:$8 sm:$0x3]
        %s219 = scalar_lea.vmem [#allocation6], 3
        %v220 = vld [vmem:[%s219] ss:$8 sm:$0x3]
        %s221 = scalar_lea.vmem [#allocation6], 4
        %v222 = vld [vmem:[%s221] ss:$8 sm:$0x3]
        %v223 = vld [vmem:[%s182] ss:$4 sm:$0x3]
        %s224 = sld [smem:[#allocation8]]
        %v225 = vstv %s224
        %v226 = vmul.f32 %v223, %v225
        %s227 = sld [smem:[#allocation8 + $0x4]]
        %v228 = vstv %s227
        %v229 = vadd.f32 %v226, %v228
        %v230 = vmax.f32 %v229, 0.0
        %v232 = vlaneseq
        %v233 = vshrl.u32 %v232, 7
        %v234 = vsub.s32 0, %v233
        %v235 = vrot.slane %v230, %v234
        %v236 = vlaneseq
        %v237 = vshrl.u32 %v236, 7
        %v238 = vsub.s32 1, %v237
        %v239 = vrot.slane %v230, %v238
        %242 = vrot.lane.b32.xlu0 %v235, 16
        %v243 = vpop.permute.xlu0 %242
        %244 = vrot.lane.b32.xlu0 %v239, 16
        %v245 = vpop.permute.xlu0 %244
        %v246 = vlaneseq
        %v247 = vand.u32 %v246, 127
        %vm248 = vcmp.lt.s32.totalorder %v247, 16
        %v249 = vsel %vm248, %v243, %v245
        %v250 = vsel %vm248, %v245, %v243
        %v252 = vlaneseq
        %v253 = vshrl.u32 %v252, 7
        %v254 = vsub.s32 0, %v253
        %v255 = vrot.slane %v214, %v254
        %v256 = vlaneseq
        %v257 = vshrl.u32 %v256, 7
        %v258 = vsub.s32 1, %v257
        %v259 = vrot.slane %v214, %v258
        %v262 = vmul.f32 %v250, %v255
        %v263 = vmul.f32 %v249, %v259
        %v266 = vcombine.low %v262, %v263
        %v268 = vunpack.c.l.s4 1966171168
        %v269 = vunpack.c.0.s8 %v268
        %v270 = vlaneseq
        %v271 = vshrl.u32 %v270, 7
        %v272 = vsub.s32 %v269, %v271
        %v273 = vrot.slane %v266, %v272
        %v275 = vunpack.c.l.s4 1966171168
        %v276 = vunpack.c.0.s8 %v275
        %v277 = vlaneseq
        %v278 = vshrl.u32 %v277, 7
        %v279 = vsub.s32 %v276, %v278
        %v280 = vrot.slane %v273, %v279
        %v282 = vmax.f32 %v230, %v280
        %283 = vrot.lane.b32.xlu0 %v235, 112
        %v284 = vpop.permute.xlu0 %283
        %285 = vrot.lane.b32.xlu0 %v239, 112
        %v286 = vpop.permute.xlu0 %285
        %vm287 = vcmp.lt.s32.totalorder %v247, 112
        %v288 = vsel %vm287, %v284, %v286
        %v289 = vsel %vm287, %v286, %v284
        %v291 = vlaneseq
        %v292 = vshrl.u32 %v291, 7
        %v293 = vsub.s32 0, %v292
        %v294 = vrot.slane %v216, %v293
        %v295 = vlaneseq
        %v296 = vshrl.u32 %v295, 7
        %v297 = vsub.s32 1, %v296
        %v298 = vrot.slane %v216, %v297
        %v301 = vmul.f32 %v288, %v294
        %v302 = vmul.f32 %v289, %v298
        %v305 = vcombine.low %v301, %v302
        %v307 = vunpack.c.l.s4 1966171168
        %v308 = vunpack.c.0.s8 %v307
        %v309 = vlaneseq
        %v310 = vshrl.u32 %v309, 7
        %v311 = vsub.s32 %v308, %v310
        %v312 = vrot.slane %v305, %v311
        %v314 = vunpack.c.l.s4 1966171168
        %v315 = vunpack.c.0.s8 %v314
        %v316 = vlaneseq
        %v317 = vshrl.u32 %v316, 7
        %v318 = vsub.s32 %v315, %v317
        %v319 = vrot.slane %v312, %v318
        %v321 = vmax.f32 %v282, %v319
        %v323 = vlaneseq
        %v324 = vshrl.u32 %v323, 7
        %v325 = vsub.s32 0, %v324
        %v326 = vrot.slane %v321, %v325
        %v327 = vlaneseq
        %v328 = vshrl.u32 %v327, 7
        %v329 = vsub.s32 1, %v328
        %v330 = vrot.slane %v321, %v329
        %333 = vrot.lane.b32.xlu0 %v326, 1
        %v334 = vpop.permute.xlu0 %333
        %335 = vrot.lane.b32.xlu0 %v330, 1
        %v336 = vpop.permute.xlu0 %335
        %vm337 = vcmp.lt.s32.totalorder %v247, 1
        %v338 = vsel %vm337, %v334, %v336
        %v339 = vsel %vm337, %v336, %v334
        %v341 = vlaneseq
        %v342 = vshrl.u32 %v341, 7
        %v343 = vsub.s32 0, %v342
        %v344 = vrot.slane %v218, %v343
        %v345 = vlaneseq
        %v346 = vshrl.u32 %v345, 7
        %v347 = vsub.s32 1, %v346
        %v348 = vrot.slane %v218, %v347
        %v351 = vmul.f32 %v339, %v344
        %v352 = vmul.f32 %v338, %v348
        %v355 = vcombine.low %v351, %v352
        %v357 = vunpack.c.l.s4 1966171168
        %v358 = vunpack.c.0.s8 %v357
        %v359 = vlaneseq
        %v360 = vshrl.u32 %v359, 7
        %v361 = vsub.s32 %v358, %v360
        %v362 = vrot.slane %v355, %v361
        %v364 = vunpack.c.l.s4 1966171168
        %v365 = vunpack.c.0.s8 %v364
        %v366 = vlaneseq
        %v367 = vshrl.u32 %v366, 7
        %v368 = vsub.s32 %v365, %v367
        %v369 = vrot.slane %v362, %v368
        %v371 = vmax.f32 %v321, %v369
        %372 = vrot.lane.b32.xlu0 %v326, 127
        %v373 = vpop.permute.xlu0 %372
        %374 = vrot.lane.b32.xlu0 %v330, 127
        %v375 = vpop.permute.xlu0 %374
        %vm376 = vcmp.lt.s32.totalorder %v247, 127
        %v377 = vsel %vm376, %v373, %v375
        %v378 = vsel %vm376, %v375, %v373
        %v380 = vlaneseq
        %v381 = vshrl.u32 %v380, 7
        %v382 = vsub.s32 0, %v381
        %v383 = vrot.slane %v220, %v382
        %v384 = vlaneseq
        %v385 = vshrl.u32 %v384, 7
        %v386 = vsub.s32 1, %v385
        %v387 = vrot.slane %v220, %v386
        %v390 = vmul.f32 %v377, %v383
        %v391 = vmul.f32 %v378, %v387
        %v394 = vcombine.low %v390, %v391
        %v396 = vunpack.c.l.s4 1966171168
        %v397 = vunpack.c.0.s8 %v396
        %v398 = vlaneseq
        %v399 = vshrl.u32 %v398, 7
        %v400 = vsub.s32 %v397, %v399
        %v401 = vrot.slane %v394, %v400
        %v403 = vunpack.c.l.s4 1966171168
        %v404 = vunpack.c.0.s8 %v403
        %v405 = vlaneseq
        %v406 = vshrl.u32 %v405, 7
        %v407 = vsub.s32 %v404, %v406
        %v408 = vrot.slane %v401, %v407
        %v410 = vmax.f32 %v371, %v408
        %s411 = sld [smem:[#allocation8 + $0x8]]
        %v412 = vstv %s411
        %v413 = vmul.f32 %v410, %v412
        %s414 = scalar_lea.vmem %s182, 1 [#allocation2]
        %v415 = vld [vmem:[%s414] ss:$4 sm:$0x3]
        %s416 = sld [smem:[#allocation8 + $0x1]]
        %v417 = vstv %s416
        %v418 = vmul.f32 %v415, %v417
        %s419 = sld [smem:[#allocation8 + $0x5]]
        %v420 = vstv %s419
        %v421 = vadd.f32 %v418, %v420
        %v422 = vmax.f32 %v421, 0.0
        %v424 = vlaneseq
        %v425 = vshrl.u32 %v424, 7
        %v426 = vsub.s32 0, %v425
        %v427 = vrot.slane %v422, %v426
        %v428 = vlaneseq
        %v429 = vshrl.u32 %v428, 7
        %v430 = vsub.s32 1, %v429
        %v431 = vrot.slane %v422, %v430
        %434 = vrot.lane.b32.xlu0 %v427, 16
        %v435 = vpop.permute.xlu0 %434
        %436 = vrot.lane.b32.xlu0 %v431, 16
        %v437 = vpop.permute.xlu0 %436
        %v438 = vsel %vm248, %v435, %v437
        %v439 = vsel %vm248, %v437, %v435
        %v440 = vmul.f32 %v439, %v255
        %v441 = vmul.f32 %v438, %v259
        %v444 = vcombine.low %v440, %v441
        %v446 = vunpack.c.l.s4 1966171168
        %v447 = vunpack.c.0.s8 %v446
        %v448 = vlaneseq
        %v449 = vshrl.u32 %v448, 7
        %v450 = vsub.s32 %v447, %v449
        %v451 = vrot.slane %v444, %v450
        %v453 = vunpack.c.l.s4 1966171168
        %v454 = vunpack.c.0.s8 %v453
        %v455 = vlaneseq
        %v456 = vshrl.u32 %v455, 7
        %v457 = vsub.s32 %v454, %v456
        %v458 = vrot.slane %v451, %v457
        %v460 = vmax.f32 %v422, %v458
        %461 = vrot.lane.b32.xlu0 %v427, 112
        %v462 = vpop.permute.xlu0 %461
        %463 = vrot.lane.b32.xlu0 %v431, 112
        %v464 = vpop.permute.xlu0 %463
        %v465 = vsel %vm287, %v462, %v464
        %v466 = vsel %vm287, %v464, %v462
        %v467 = vmul.f32 %v465, %v294
        %v468 = vmul.f32 %v466, %v298
        %v471 = vcombine.low %v467, %v468
        %v473 = vunpack.c.l.s4 1966171168
        %v474 = vunpack.c.0.s8 %v473
        %v475 = vlaneseq
        %v476 = vshrl.u32 %v475, 7
        %v477 = vsub.s32 %v474, %v476
        %v478 = vrot.slane %v471, %v477
        %v480 = vunpack.c.l.s4 1966171168
        %v481 = vunpack.c.0.s8 %v480
        %v482 = vlaneseq
        %v483 = vshrl.u32 %v482, 7
        %v484 = vsub.s32 %v481, %v483
        %v485 = vrot.slane %v478, %v484
        %v487 = vmax.f32 %v460, %v485
        %v489 = vlaneseq
        %v490 = vshrl.u32 %v489, 7
        %v491 = vsub.s32 0, %v490
        %v492 = vrot.slane %v487, %v491
        %v493 = vlaneseq
        %v494 = vshrl.u32 %v493, 7
        %v495 = vsub.s32 1, %v494
        %v496 = vrot.slane %v487, %v495
        %499 = vrot.lane.b32.xlu0 %v492, 1
        %v500 = vpop.permute.xlu0 %499
        %501 = vrot.lane.b32.xlu0 %v496, 1
        %v502 = vpop.permute.xlu0 %501
        %v503 = vsel %vm337, %v500, %v502
        %v504 = vsel %vm337, %v502, %v500
        %v505 = vmul.f32 %v504, %v344
        %v506 = vmul.f32 %v503, %v348
        %v509 = vcombine.low %v505, %v506
        %v511 = vunpack.c.l.s4 1966171168
        %v512 = vunpack.c.0.s8 %v511
        %v513 = vlaneseq
        %v514 = vshrl.u32 %v513, 7
        %v515 = vsub.s32 %v512, %v514
        %v516 = vrot.slane %v509, %v515
        %v518 = vunpack.c.l.s4 1966171168
        %v519 = vunpack.c.0.s8 %v518
        %v520 = vlaneseq
        %v521 = vshrl.u32 %v520, 7
        %v522 = vsub.s32 %v519, %v521
        %v523 = vrot.slane %v516, %v522
        %v525 = vmax.f32 %v487, %v523
        %526 = vrot.lane.b32.xlu0 %v492, 127
        %v527 = vpop.permute.xlu0 %526
        %528 = vrot.lane.b32.xlu0 %v496, 127
        %v529 = vpop.permute.xlu0 %528
        %v530 = vsel %vm376, %v527, %v529
        %v531 = vsel %vm376, %v529, %v527
        %v532 = vmul.f32 %v530, %v383
        %v533 = vmul.f32 %v531, %v387
        %v536 = vcombine.low %v532, %v533
        %v538 = vunpack.c.l.s4 1966171168
        %v539 = vunpack.c.0.s8 %v538
        %v540 = vlaneseq
        %v541 = vshrl.u32 %v540, 7
        %v542 = vsub.s32 %v539, %v541
        %v543 = vrot.slane %v536, %v542
        %v545 = vunpack.c.l.s4 1966171168
        %v546 = vunpack.c.0.s8 %v545
        %v547 = vlaneseq
        %v548 = vshrl.u32 %v547, 7
        %v549 = vsub.s32 %v546, %v548
        %v550 = vrot.slane %v543, %v549
        %v552 = vmax.f32 %v525, %v550
        %s553 = sld [smem:[#allocation8 + $0x9]]
        %v554 = vstv %s553
        %v555 = vmul.f32 %v552, %v554
        %v556 = vadd.f32 %v413, %v555
        %s557 = scalar_lea.vmem %s182, 2 [#allocation2]
        %v558 = vld [vmem:[%s557] ss:$4 sm:$0x3]
        %s559 = sld [smem:[#allocation8 + $0x2]]
        %v560 = vstv %s559
        %v561 = vmul.f32 %v558, %v560
        %s562 = sld [smem:[#allocation8 + $0x6]]
        %v563 = vstv %s562
        %v564 = vadd.f32 %v561, %v563
        %v565 = vmax.f32 %v564, 0.0
        %v567 = vlaneseq
        %v568 = vshrl.u32 %v567, 7
        %v569 = vsub.s32 0, %v568
        %v570 = vrot.slane %v565, %v569
        %v571 = vlaneseq
        %v572 = vshrl.u32 %v571, 7
        %v573 = vsub.s32 1, %v572
        %v574 = vrot.slane %v565, %v573
        %577 = vrot.lane.b32.xlu0 %v570, 16
        %v578 = vpop.permute.xlu0 %577
        %579 = vrot.lane.b32.xlu0 %v574, 16
        %v580 = vpop.permute.xlu0 %579
        %v581 = vsel %vm248, %v578, %v580
        %v582 = vsel %vm248, %v580, %v578
        %v583 = vmul.f32 %v582, %v255
        %v584 = vmul.f32 %v581, %v259
        %v587 = vcombine.low %v583, %v584
        %v589 = vunpack.c.l.s4 1966171168
        %v590 = vunpack.c.0.s8 %v589
        %v591 = vlaneseq
        %v592 = vshrl.u32 %v591, 7
        %v593 = vsub.s32 %v590, %v592
        %v594 = vrot.slane %v587, %v593
        %v596 = vunpack.c.l.s4 1966171168
        %v597 = vunpack.c.0.s8 %v596
        %v598 = vlaneseq
        %v599 = vshrl.u32 %v598, 7
        %v600 = vsub.s32 %v597, %v599
        %v601 = vrot.slane %v594, %v600
        %v603 = vmax.f32 %v565, %v601
        %604 = vrot.lane.b32.xlu0 %v570, 112
        %v605 = vpop.permute.xlu0 %604
        %606 = vrot.lane.b32.xlu0 %v574, 112
        %v607 = vpop.permute.xlu0 %606
        %v608 = vsel %vm287, %v605, %v607
        %v609 = vsel %vm287, %v607, %v605
        %v610 = vmul.f32 %v608, %v294
        %v611 = vmul.f32 %v609, %v298
        %v614 = vcombine.low %v610, %v611
        %v616 = vunpack.c.l.s4 1966171168
        %v617 = vunpack.c.0.s8 %v616
        %v618 = vlaneseq
        %v619 = vshrl.u32 %v618, 7
        %v620 = vsub.s32 %v617, %v619
        %v621 = vrot.slane %v614, %v620
        %v623 = vunpack.c.l.s4 1966171168
        %v624 = vunpack.c.0.s8 %v623
        %v625 = vlaneseq
        %v626 = vshrl.u32 %v625, 7
        %v627 = vsub.s32 %v624, %v626
        %v628 = vrot.slane %v621, %v627
        %v630 = vmax.f32 %v603, %v628
        %v632 = vlaneseq
        %v633 = vshrl.u32 %v632, 7
        %v634 = vsub.s32 0, %v633
        %v635 = vrot.slane %v630, %v634
        %v636 = vlaneseq
        %v637 = vshrl.u32 %v636, 7
        %v638 = vsub.s32 1, %v637
        %v639 = vrot.slane %v630, %v638
        %642 = vrot.lane.b32.xlu0 %v635, 1
        %v643 = vpop.permute.xlu0 %642
        %644 = vrot.lane.b32.xlu0 %v639, 1
        %v645 = vpop.permute.xlu0 %644
        %v646 = vsel %vm337, %v643, %v645
        %v647 = vsel %vm337, %v645, %v643
        %v648 = vmul.f32 %v647, %v344
        %v649 = vmul.f32 %v646, %v348
        %v652 = vcombine.low %v648, %v649
        %v654 = vunpack.c.l.s4 1966171168
        %v655 = vunpack.c.0.s8 %v654
        %v656 = vlaneseq
        %v657 = vshrl.u32 %v656, 7
        %v658 = vsub.s32 %v655, %v657
        %v659 = vrot.slane %v652, %v658
        %v661 = vunpack.c.l.s4 1966171168
        %v662 = vunpack.c.0.s8 %v661
        %v663 = vlaneseq
        %v664 = vshrl.u32 %v663, 7
        %v665 = vsub.s32 %v662, %v664
        %v666 = vrot.slane %v659, %v665
        %v668 = vmax.f32 %v630, %v666
        %669 = vrot.lane.b32.xlu0 %v635, 127
        %v670 = vpop.permute.xlu0 %669
        %671 = vrot.lane.b32.xlu0 %v639, 127
        %v672 = vpop.permute.xlu0 %671
        %v673 = vsel %vm376, %v670, %v672
        %v674 = vsel %vm376, %v672, %v670
        %v675 = vmul.f32 %v673, %v383
        %v676 = vmul.f32 %v674, %v387
        %v679 = vcombine.low %v675, %v676
        %v681 = vunpack.c.l.s4 1966171168
        %v682 = vunpack.c.0.s8 %v681
        %v683 = vlaneseq
        %v684 = vshrl.u32 %v683, 7
        %v685 = vsub.s32 %v682, %v684
        %v686 = vrot.slane %v679, %v685
        %v688 = vunpack.c.l.s4 1966171168
        %v689 = vunpack.c.0.s8 %v688
        %v690 = vlaneseq
        %v691 = vshrl.u32 %v690, 7
        %v692 = vsub.s32 %v689, %v691
        %v693 = vrot.slane %v686, %v692
        %v695 = vmax.f32 %v668, %v693
        %s696 = sld [smem:[#allocation8 + $0xa]]
        %v697 = vstv %s696
        %v698 = vmul.f32 %v695, %v697
        %v699 = vadd.f32 %v556, %v698
        %s700 = scalar_lea.vmem %s182, 3 [#allocation2]
        %v701 = vld [vmem:[%s700] ss:$4 sm:$0x3]
        %s702 = sld [smem:[#allocation8 + $0x3]]
        %v703 = vstv %s702
        %v704 = vmul.f32 %v701, %v703
        %s705 = sld [smem:[#allocation8 + $0x7]]
        %v706 = vstv %s705
        %v707 = vadd.f32 %v704, %v706
        %v708 = vmax.f32 %v707, 0.0
        %v710 = vlaneseq
        %v711 = vshrl.u32 %v710, 7
        %v712 = vsub.s32 0, %v711
        %v713 = vrot.slane %v708, %v712
        %v714 = vlaneseq
        %v715 = vshrl.u32 %v714, 7
        %v716 = vsub.s32 1, %v715
        %v717 = vrot.slane %v708, %v716
        %720 = vrot.lane.b32.xlu0 %v713, 16
        %v721 = vpop.permute.xlu0 %720
        %722 = vrot.lane.b32.xlu0 %v717, 16
        %v723 = vpop.permute.xlu0 %722
        %v724 = vsel %vm248, %v721, %v723
        %v725 = vsel %vm248, %v723, %v721
        %v726 = vmul.f32 %v725, %v255
        %v727 = vmul.f32 %v724, %v259
        %v730 = vcombine.low %v726, %v727
        %v732 = vunpack.c.l.s4 1966171168
        %v733 = vunpack.c.0.s8 %v732
        %v734 = vlaneseq
        %v735 = vshrl.u32 %v734, 7
        %v736 = vsub.s32 %v733, %v735
        %v737 = vrot.slane %v730, %v736
        %v739 = vunpack.c.l.s4 1966171168
        %v740 = vunpack.c.0.s8 %v739
        %v741 = vlaneseq
        %v742 = vshrl.u32 %v741, 7
        %v743 = vsub.s32 %v740, %v742
        %v744 = vrot.slane %v737, %v743
        %v746 = vmax.f32 %v708, %v744
        %747 = vrot.lane.b32.xlu0 %v713, 112
        %v748 = vpop.permute.xlu0 %747
        %749 = vrot.lane.b32.xlu0 %v717, 112
        %v750 = vpop.permute.xlu0 %749
        %v751 = vsel %vm287, %v748, %v750
        %v752 = vsel %vm287, %v750, %v748
        %v753 = vmul.f32 %v751, %v294
        %v754 = vmul.f32 %v752, %v298
        %v757 = vcombine.low %v753, %v754
        %v759 = vunpack.c.l.s4 1966171168
        %v760 = vunpack.c.0.s8 %v759
        %v761 = vlaneseq
        %v762 = vshrl.u32 %v761, 7
        %v763 = vsub.s32 %v760, %v762
        %v764 = vrot.slane %v757, %v763
        %v766 = vunpack.c.l.s4 1966171168
        %v767 = vunpack.c.0.s8 %v766
        %v768 = vlaneseq
        %v769 = vshrl.u32 %v768, 7
        %v770 = vsub.s32 %v767, %v769
        %v771 = vrot.slane %v764, %v770
        %v773 = vmax.f32 %v746, %v771
        %v775 = vlaneseq
        %v776 = vshrl.u32 %v775, 7
        %v777 = vsub.s32 0, %v776
        %v778 = vrot.slane %v773, %v777
        %v779 = vlaneseq
        %v780 = vshrl.u32 %v779, 7
        %v781 = vsub.s32 1, %v780
        %v782 = vrot.slane %v773, %v781
        %785 = vrot.lane.b32.xlu0 %v778, 1
        %v786 = vpop.permute.xlu0 %785
        %787 = vrot.lane.b32.xlu0 %v782, 1
        %v788 = vpop.permute.xlu0 %787
        %v789 = vsel %vm337, %v786, %v788
        %v790 = vsel %vm337, %v788, %v786
        %v791 = vmul.f32 %v790, %v344
        %v792 = vmul.f32 %v789, %v348
        %v795 = vcombine.low %v791, %v792
        %v797 = vunpack.c.l.s4 1966171168
        %v798 = vunpack.c.0.s8 %v797
        %v799 = vlaneseq
        %v800 = vshrl.u32 %v799, 7
        %v801 = vsub.s32 %v798, %v800
        %v802 = vrot.slane %v795, %v801
        %v804 = vunpack.c.l.s4 1966171168
        %v805 = vunpack.c.0.s8 %v804
        %v806 = vlaneseq
        %v807 = vshrl.u32 %v806, 7
        %v808 = vsub.s32 %v805, %v807
        %v809 = vrot.slane %v802, %v808
        %v811 = vmax.f32 %v773, %v809
        %812 = vrot.lane.b32.xlu0 %v778, 127
        %v813 = vpop.permute.xlu0 %812
        %814 = vrot.lane.b32.xlu0 %v782, 127
        %v815 = vpop.permute.xlu0 %814
        %v816 = vsel %vm376, %v813, %v815
        %v817 = vsel %vm376, %v815, %v813
        %v818 = vmul.f32 %v816, %v383
        %v819 = vmul.f32 %v817, %v387
        %v822 = vcombine.low %v818, %v819
        %v824 = vunpack.c.l.s4 1966171168
        %v825 = vunpack.c.0.s8 %v824
        %v826 = vlaneseq
        %v827 = vshrl.u32 %v826, 7
        %v828 = vsub.s32 %v825, %v827
        %v829 = vrot.slane %v822, %v828
        %v831 = vunpack.c.l.s4 1966171168
        %v832 = vunpack.c.0.s8 %v831
        %v833 = vlaneseq
        %v834 = vshrl.u32 %v833, 7
        %v835 = vsub.s32 %v832, %v834
        %v836 = vrot.slane %v829, %v835
        %v838 = vmax.f32 %v811, %v836
        %s839 = sld [smem:[#allocation8 + $0xb]]
        %v840 = vstv %s839
        %v841 = vmul.f32 %v838, %v840
        %v842 = vadd.f32 %v699, %v841
        %s843 = sld [smem:[#allocation8 + $0xc]]
        %v844 = vstv %s843
        %v845 = vadd.f32 %v842, %v844
        %v846 = vmax.f32 %v845, 0.0
        %vm847 = vcmp.gt.f32.partialorder %v222, 0.0
        %v848 = vsel %vm847, %v846, -inf
        %v850 = vlaneseq
        %v851 = vshrl.u32 %v850, 7
        %v852 = vsub.s32 0, %v851
        %v853 = vrot.slane %v848, %v852
        %v854 = vlaneseq
        %v855 = vshrl.u32 %v854, 7
        %v856 = vsub.s32 1, %v855
        %v857 = vrot.slane %v848, %v856
        %vm860 = vcmask 1040384
        %v861 = vsel %vm860, %v853, -inf
        %v862 = vsel %vm860, %v857, -inf
        %v863 = vmax.f32 %v861, %v862
        %864 = vmax.xlane.f32.xlu0 %v863
        %v865 = vpop.xlane.xlu0 %864
        %v867 = vlaneseq
        %v868 = vshrl.u32 %v867, 7
        %v869 = vsub.s32 0, %v868
        %v870 = vrot.slane %v865, %v869
        %v872 = vsub.f32 %v848, %v870
        %v873 = vmul.f32 %v872, 1.442695
        %v874 = vpow.pop %v873
        %v876 = vlaneseq
        %v877 = vshrl.u32 %v876, 7
        %v878 = vsub.s32 0, %v877
        %v879 = vrot.slane %v874, %v878
        %v880 = vlaneseq
        %v881 = vshrl.u32 %v880, 7
        %v882 = vsub.s32 1, %v881
        %v883 = vrot.slane %v874, %v882
        %v886 = vsel %vm860, %v879, 0.0
        %v887 = vsel %vm860, %v883, 0.0
        %v888 = vadd.f32 %v886, %v887
        %889 = vadd.xlane.f32.xlu0 %v888
        %v890 = vpop.xlane.xlu0 %889
        %v891 = vrcp.pop %v890
        %v893 = vlaneseq
        %v894 = vshrl.u32 %v893, 7
        %v895 = vsub.s32 0, %v894
        %v896 = vrot.slane %v891, %v895
        %v898 = vmul.f32 %v874, %v896
        %v899 = vadd.f32 %v898, 1.0
        %v900 = vmul.f32 %v223, %v899
        %v901 = vlaneseq
        %vm902 = vcmp.ge.s32.totalorder %v901, 0
        %vm903 = vcmp.lt.s32.totalorder %v901, 256
        %vm904 = vmand %vm902, %vm903
        %905 = vst.msk [vmem:[%s213] ss:$4 sm:$0x3] %vm904, %v900
        %v906 = vld [vmem:[%s414] ss:$4 sm:$0x3]
        %v907 = vmul.f32 %v906, %v899
        %s908 = scalar_lea.vmem %s213, 1 [#allocation9]
        %909 = vst.msk [vmem:[%s908] ss:$4 sm:$0x3] %vm904, %v907
        %v910 = vld [vmem:[%s557] ss:$4 sm:$0x3]
        %v911 = vmul.f32 %v910, %v899
        %s912 = scalar_lea.vmem %s213, 2 [#allocation9]
        %913 = vst.msk [vmem:[%s912] ss:$4 sm:$0x3] %vm904, %v911
        %v914 = vld [vmem:[%s700] ss:$4 sm:$0x3]
        %v915 = vmul.f32 %v914, %v899
        %s916 = scalar_lea.vmem %s213, 3 [#allocation9]
        %917 = vst.msk [vmem:[%s916] ss:$4 sm:$0x3] %vm904, %v915
        %s918 = sand.u32 %s98, 1
        %s919 = scalar_lea.sflag [#allocation4], %s918
        %s920 = sand.u32 %s98, 1
        %s921 = smul.addr %s920, 8
        %s922 = scalar_lea.vmem [#allocation9], %s921
        // Predicated region
        $region45: #{tpu_custom_call.1} parent=31 // pred_check
          %p923 = pneg %p108
        $region46: #{tpu_custom_call.1} parent=31 // pred_check_branch
          %925 = sbr.rel (%p923) target = $region48
        $region47: #{tpu_custom_call.1} parent=31 // pred_region
          %s927 = ssub.s32 128, 128
          %928 = vsyncadd %s919, %s927
          %s929 = smul.addr %s22, 2
          %s930 = smul.addr %s929, 64
          %s931 = scalar_lea.hbm %s3, %s930
          %s933 = sshll.u32 %s922, 4
          %s934 = int_to_ptr.vmem [resolvable:$true] %s933
          %936 = dma.vmem_to_hbm [thread:$0]  %s934, 128, %s931, %s919
        $region48: #{tpu_custom_call.1} parent=31 // pred_fallthru
          _
      $region32: #{tpu_custom_call.1} parent=5 // pred_fallthru
        _
      %p937 = scmp.le.s32.totalorder 2, %s17
      // Predicated region
      $region49: #{tpu_custom_call.1} parent=5 // pred_check
        %p938 = pneg %p937
      $region50: #{tpu_custom_call.1} parent=5 // pred_check_branch
        %940 = sbr.rel (%p938) target = $region52
      $region51: #{tpu_custom_call.1} parent=5 // pred_region
        %s941 = ssub.s32 %s17, 2
        // Predicated region
        $region53: #{tpu_custom_call.1} parent=51 // pred_check
          %p942 = pneg %p114
        $region54: #{tpu_custom_call.1} parent=51 // pred_check_branch
          %944 = sbr.rel (%p942) target = $region56
        $region55: #{tpu_custom_call.1} parent=51 // pred_region
          %s945 = sand.u32 %s99, 1
          %s946 = scalar_lea.sflag [#allocation4], %s945
          %s947 = sand.u32 %s99, 1
          %s948 = smul.addr %s947, 8
          %s949 = scalar_lea.vmem [#allocation9], %s948
          %950 = dma.done %s946, 128
        $region56: #{tpu_custom_call.1} parent=51 // pred_fallthru
          _
      $region52: #{tpu_custom_call.1} parent=5 // pred_fallthru
        _
    $region6: #{tpu_custom_call.1} parent=1 // loop_footer
      %s21 = sadd.s32 1, %s17
    $region7: #{tpu_custom_call.1} parent=1 // loop_footer_branch
      %16 = sbr.rel target = $region3
    $region8: #{tpu_custom_call.1} parent=1 // loop_exit
      _
    %951 = vsyncpa [#allocation3], 1
    %s952 = scalar_lea.sflag [#allocation3], 1
    %953 = vsyncpa %s952, 1
    %954 = vsyncpa [#allocation7], 1
    %955 = vsyncpa [#allocation4], 1
    %s956 = scalar_lea.sflag [#allocation4], 1
    %957 = vsyncpa %s956, 1
    %958 = vsyncpa [#allocation5], 1
    %s959 = scalar_lea.sflag [#allocation5], 1
    %960 = vsyncpa %s959, 1

</llo_original>
